<compile_context>
chip_gen: v7x
topology: tpu7x:2x2x1
jax: 0.10.0
libtpu: 0.0.40
codegen_flags: <defaults>
</compile_context>

<pallas_src>
import functools

import jax
import jax.numpy as jnp
from jax.experimental import pallas as pl
from jax.experimental.pallas import tpu as pltpu


def _round_up(x, m):
    return ((x + m - 1) // m) * m


def _vmem_plan():
    """Returns (vmem_limit_bytes, target_hbm_bytes_per_step) per generation."""
    try:
        cap = pltpu.get_tpu_info().vmem_capacity_bytes
    except Exception:
        cap = 64 * 1024 * 1024  # unknown -> conservative (v7x-like) plan
    if cap <= 64 * 1024 * 1024:
        # v7x: only 64 MiB VMEM/TC but ~3.2 TB/s HBM -> bigger bytes/step.
        return 48 * 1024 * 1024, 16 * 1024 * 1024
    # v5e / v6e: 128 MiB physical VMEM, 0.8-1.4 TB/s HBM.
    return 64 * 1024 * 1024, 8 * 1024 * 1024


def _choose_tile_rows(B, D, vmem_limit, target_step_bytes):
    """Row-tile size: big enough to amortize the ~0.35 us/step grid overhead,
    small enough that the double-buffered working set (x0, x1, y, euclidean)
    fits in ~75% of the scoped VMEM limit.  Multiple of 8 (sublane); the
    partial last block handles any remainder, so B need not be divisible."""
    padded_d = _round_up(max(D, 1), 128)   # VMEM blocks pad lanes to 128
    # Per-row VMEM bytes: x0 + x1 double-buffered (4 * padded_d * 4B) plus the
    # narrow y / euclidean blocks (4 * 128 * 4B)  =>  16 * (padded_d + 128).
    rows_cap = (vmem_limit * 3 // 4) // (16 * (padded_d + 128))
    rows_target = max(1, target_step_bytes // (2 * D * 4))
    rows = max(8, min(rows_cap, rows_target))
    rows = max(8, (rows // 8) * 8)
    # Never allocate more rows than the (8-aligned) batch needs.
    rows = min(rows, _round_up(B, 8))
    if B >= 256:
        # Keep >= 2 grid steps so the "parallel" axis can shard across both
        # v7x TensorCores (harmless on single-TC v5e/v6e).
        rows = min(rows, _round_up((B + 1) // 2, 8))
    return max(rows, 8)


def _dm_contrastive_kernel(x0_ref, x1_ref, y_ref, loss_ref, eucl_ref,
                           *, l_m, u_m, batch):
    # x0_ref, x1_ref : (TB, D)   feature tiles (last block may run past B)
    # y_ref          : (TB, 1)   labels (tail rows of last block are garbage)
    # loss_ref       : (1, 1, 1) per-tile partial loss sum
    # eucl_ref       : (TB, 1)   per-sample euclidean distance
    tb = x0_ref.shape[0]
    row = jax.lax.broadcasted_iota(jnp.int32, (tb, 1), 0) + pl.program_id(0) * tb
    valid = row < batch                      # (TB, 1) in-kernel validity mask

    diff = x0_ref[...] - x1_ref[...]         # (TB, D)  VPU
    # Select (not multiply) so garbage NaN/Inf in out-of-bounds tail rows of a
    # partial last block cannot poison the reduction.
    diff = jnp.where(valid, diff, 0.0)
    dist_sq = jnp.sum(diff * diff, axis=1, keepdims=True)   # (TB, 1)
    euclidean = jnp.sqrt(dist_sq)                           # EUP

    y = y_ref[...]                           # (TB, 1)
    ld = jnp.maximum(euclidean - l_m, 0.0)
    ud = jnp.maximum(u_m - euclidean, 0.0)
    per_sample = y * (ld * ld) + (1.0 - y) * (ud * ud)
    per_sample = jnp.where(valid, per_sample, 0.0)

    loss_ref[0] = jnp.sum(per_sample, keepdims=True)        # (1, 1)
    eucl_ref[...] = euclidean


def double_margin_contrastive_loss(x0, x1, y, *, l_m, u_m, tile_rows=None):
    """Returns (loss, y, euclidean), matching the PyTorch module's forward."""
    assert x0.shape == x1.shape and x0.ndim == 2
    B, D = x0.shape
    x0 = x0.astype(jnp.float32)
    x1 = x1.astype(jnp.float32)
    y2 = y.astype(jnp.float32).reshape(B, 1)

    vmem_limit, target_step_bytes = _vmem_plan()
    if tile_rows is None:
        tb = _choose_tile_rows(B, D, vmem_limit, target_step_bytes)
    else:
        assert tile_rows % 8 == 0 or tile_rows == B
        tb = tile_rows
    nt = pl.cdiv(B, tb)

    kernel = functools.partial(
        _dm_contrastive_kernel, l_m=float(l_m), u_m=float(u_m), batch=B)

    cost = pl.CostEstimate(
        flops=3 * B * D + 10 * B,
        transcendentals=B,
        bytes_accessed=(2 * B * D + 2 * B + nt) * 4)

    partial_loss, eucl = pl.pallas_call(
        kernel,
        out_shape=(
            jax.ShapeDtypeStruct((nt, 1, 1), jnp.float32),   # per-tile loss sums
            jax.ShapeDtypeStruct((B, 1), jnp.float32),       # euclidean distance
        ),
        grid_spec=pl.GridSpec(
            grid=(nt,),
            in_specs=[
                pl.BlockSpec((tb, D), lambda i: (i, 0)),
                pl.BlockSpec((tb, D), lambda i: (i, 0)),
                pl.BlockSpec((tb, 1), lambda i: (i, 0)),
            ],
            out_specs=[
                pl.BlockSpec((1, 1, 1), lambda i: (i, 0, 0)),
                pl.BlockSpec((tb, 1), lambda i: (i, 0)),
            ],
        ),
        compiler_params=pltpu.CompilerParams(
            dimension_semantics=("parallel",),
            vmem_limit_bytes=vmem_limit),
        cost_estimate=cost,
    )(x0, x1, y2)

    loss = jnp.sum(partial_loss) / 2.0 / B
    euclidean = eucl[:, 0]
    return loss, y, euclidean


def _reference(x0, x1, y, l_m, u_m):
    diff = x0 - x1
    dist_sq = jnp.sum(diff ** 2, axis=1)
    euclidean = jnp.sqrt(dist_sq)
    ld = jnp.maximum(euclidean - l_m, 0.0)
    ud = jnp.maximum(u_m - euclidean, 0.0)
    loss = y * ld ** 2 + (1.0 - y) * ud ** 2
    return jnp.sum(loss) / 2.0 / x0.shape[0], y, euclidean


if __name__ == "__main__":
    key = jax.random.PRNGKey(0)
    k0, k1, ky, k2, k3, k4 = jax.random.split(key, 6)

    l_m, u_m = 0.5, 2.0

    # Test 1: small shapes, single-tile path (auto tile selection).
    B, D = 8, 32
    x0 = jax.random.normal(k0, (B, D), dtype=jnp.float32)
    x1 = jax.random.normal(k1, (B, D), dtype=jnp.float32)
    y = jax.random.bernoulli(ky, 0.5, (B,)).astype(jnp.float32)

    loss, y_out, eucl = double_margin_contrastive_loss(
        x0, x1, y, l_m=l_m, u_m=u_m)
    jax.block_until_ready((loss, y_out, eucl))

    ref_loss, _, ref_eucl = _reference(x0, x1, y, l_m, u_m)
    assert jnp.allclose(loss, ref_loss, rtol=1e-5, atol=1e-5), (loss, ref_loss)
    assert jnp.allclose(eucl, ref_eucl, rtol=1e-5, atol=1e-5)

    # Test 2: multi-tile grid with a partial (masked) last block, forced tile.
    B2, D2 = 260, 16
    x0b = jax.random.normal(k2, (B2, D2), dtype=jnp.float32)
    x1b = jax.random.normal(k3, (B2, D2), dtype=jnp.float32)
    yb = jax.random.bernoulli(k4, 0.5, (B2,)).astype(jnp.float32)

    loss2, _, eucl2 = double_margin_contrastive_loss(
        x0b, x1b, yb, l_m=l_m, u_m=u_m, tile_rows=128)
    jax.block_until_ready((loss2, eucl2))

    ref_loss2, _, ref_eucl2 = _reference(x0b, x1b, yb, l_m, u_m)
    assert jnp.allclose(loss2, ref_loss2, rtol=1e-5, atol=1e-5), (loss2, ref_loss2)
    assert jnp.allclose(eucl2, ref_eucl2, rtol=1e-5, atol=1e-5)

    # Test 3: same data with automatic tile selection (nt>=2 + partial block).
    loss3, _, eucl3 = double_margin_contrastive_loss(
        x0b, x1b, yb, l_m=l_m, u_m=u_m)
    jax.block_until_ready((loss3, eucl3))
    assert jnp.allclose(loss3, ref_loss2, rtol=1e-5, atol=1e-5), (loss3, ref_loss2)
    assert jnp.allclose(eucl3, ref_eucl2, rtol=1e-5, atol=1e-5)

    print("KERNEL_OK")
</pallas_src>

<mosaic_0001>
module attributes {stable_mosaic.version = 11 : i64} {
  func.func @_dm_contrastive_kernel(%arg0: i32, %arg1: memref<8x32xf32, #tpu.memory_space<vmem>>, %arg2: memref<8x32xf32, #tpu.memory_space<vmem>>, %arg3: memref<8x1xf32, #tpu.memory_space<vmem>>, %arg4: memref<1x1x1xf32, #tpu.memory_space<vmem>>, %arg5: memref<8x1xf32, #tpu.memory_space<vmem>>) attributes {dimension_semantics = [#tpu.dimension_semantics<parallel>], iteration_bounds = array<i64: 1>, scalar_prefetch = 0 : i64, scratch_operands = 0 : i64, tpu.core_type = #tpu.core_type<tc>, window_params = [{transform_indices = @transform_0, window_bounds = array<i64: 8, 32>}, {transform_indices = @transform_1, window_bounds = array<i64: 8, 32>}, {transform_indices = @transform_2, window_bounds = array<i64: 8, 1>}, {transform_indices = @transform_3, window_bounds = array<i64: 1, 1, 1>}, {transform_indices = @transform_4, window_bounds = array<i64: 8, 1>}]} {
    %0 = tpu.iota {dimensions = array<i32: 0>} : vector<8x1xi32>
    %c8_i32 = arith.constant 8 : i32
    %1 = arith.muli %arg0, %c8_i32 : i32
    %2 = vector.broadcast %1 : i32 to vector<8x1xi32>
    %3 = arith.addi %0, %2 : vector<8x1xi32>
    %c8_i32_0 = arith.constant 8 : i32
    %4 = vector.broadcast %c8_i32_0 : i32 to vector<8x1xi32>
    %5 = arith.cmpi slt, %3, %4 : vector<8x1xi32>
    %c0 = arith.constant 0 : index
    %c0_1 = arith.constant 0 : index
    %6 = vector.load %arg1[%c0, %c0_1] : memref<8x32xf32, #tpu.memory_space<vmem>>, vector<8x32xf32>
    %c0_2 = arith.constant 0 : index
    %c0_3 = arith.constant 0 : index
    %7 = vector.load %arg2[%c0_2, %c0_3] : memref<8x32xf32, #tpu.memory_space<vmem>>, vector<8x32xf32>
    %8 = arith.subf %6, %7 : vector<8x32xf32>
    %cst = arith.constant 0.000000e+00 : f32
    %9 = vector.shape_cast %5 : vector<8x1xi1> to vector<8x1xi1>
    %10 = vector.broadcast %9 : vector<8x1xi1> to vector<8x32xi1>
    %11 = vector.broadcast %cst : f32 to vector<8x32xf32>
    %12 = arith.select %10, %8, %11 : vector<8x32xi1>, vector<8x32xf32>
    %13 = arith.mulf %12, %12 : vector<8x32xf32>
    %cst_4 = arith.constant dense<0.000000e+00> : vector<8xf32>
    %14 = vector.multi_reduction <add>, %13, %cst_4 [1] : vector<8x32xf32> to vector<8xf32>
    %15 = vector.shape_cast %14 : vector<8xf32> to vector<8x1xf32>
    %16 = math.sqrt %15 : vector<8x1xf32>
    %c0_5 = arith.constant 0 : index
    %c0_6 = arith.constant 0 : index
    %17 = vector.load %arg3[%c0_5, %c0_6] : memref<8x1xf32, #tpu.memory_space<vmem>>, vector<8x1xf32>
    %cst_7 = arith.constant 5.000000e-01 : f32
    %18 = vector.broadcast %cst_7 : f32 to vector<8x1xf32>
    %19 = arith.subf %16, %18 : vector<8x1xf32>
    %cst_8 = arith.constant 0.000000e+00 : f32
    %20 = vector.broadcast %cst_8 : f32 to vector<8x1xf32>
    %21 = arith.maximumf %19, %20 : vector<8x1xf32>
    %cst_9 = arith.constant 2.000000e+00 : f32
    %22 = vector.broadcast %cst_9 : f32 to vector<8x1xf32>
    %23 = arith.subf %22, %16 : vector<8x1xf32>
    %cst_10 = arith.constant 0.000000e+00 : f32
    %24 = vector.broadcast %cst_10 : f32 to vector<8x1xf32>
    %25 = arith.maximumf %23, %24 : vector<8x1xf32>
    %26 = arith.mulf %21, %21 : vector<8x1xf32>
    %27 = arith.mulf %17, %26 : vector<8x1xf32>
    %cst_11 = arith.constant 1.000000e+00 : f32
    %28 = vector.broadcast %cst_11 : f32 to vector<8x1xf32>
    %29 = arith.subf %28, %17 : vector<8x1xf32>
    %30 = arith.mulf %25, %25 : vector<8x1xf32>
    %31 = arith.mulf %29, %30 : vector<8x1xf32>
    %32 = arith.addf %27, %31 : vector<8x1xf32>
    %cst_12 = arith.constant 0.000000e+00 : f32
    %33 = vector.broadcast %cst_12 : f32 to vector<8x1xf32>
    %34 = arith.select %5, %32, %33 : vector<8x1xi1>, vector<8x1xf32>
    %35 = vector.shape_cast %34 : vector<8x1xf32> to vector<1x8x1xf32>
    %cst_13 = arith.constant dense<0.000000e+00> : vector<1xf32>
    %36 = vector.multi_reduction <add>, %35, %cst_13 [1, 2] : vector<1x8x1xf32> to vector<1xf32>
    %37 = vector.shape_cast %36 : vector<1xf32> to vector<1x1x1xf32>
    %38 = vector.extract %37[0, 0, 0] : f32 from vector<1x1x1xf32>
    %39 = vector.broadcast %38 : f32 to vector<1x1xf32>
    %c0_14 = arith.constant 0 : index
    %c0_15 = arith.constant 0 : index
    %c0_16 = arith.constant 0 : index
    %40 = vector.load %arg4[%c0_14, %c0_15, %c0_16] : memref<1x1x1xf32, #tpu.memory_space<vmem>>, vector<1x1x1xf32>
    %41 = vector.shape_cast %40 : vector<1x1x1xf32> to vector<1x1xf32>
    %42 = vector.shape_cast %39 : vector<1x1xf32> to vector<1x1x1xf32>
    tpu.vector_store %arg4[%c0_14, %c0_15, %c0_16], %42 {strides = array<i32>} : memref<1x1x1xf32, #tpu.memory_space<vmem>>, vector<1x1x1xf32>,
    %c0_17 = arith.constant 0 : index
    %c0_18 = arith.constant 0 : index
    %43 = vector.load %arg5[%c0_17, %c0_18] : memref<8x1xf32, #tpu.memory_space<vmem>>, vector<8x1xf32>
    tpu.vector_store %arg5[%c0_17, %c0_18], %16 {strides = array<i32>} : memref<8x1xf32, #tpu.memory_space<vmem>>, vector<8x1xf32>,
    return
  }
  func.func @transform_0(%arg0: i32) -> (i32, i32) {
    %c0_i32 = arith.constant 0 : i32
    %c0_i32_0 = arith.constant 0 : i32
    return %arg0, %c0_i32 : i32, i32
  }
  func.func @transform_1(%arg0: i32) -> (i32, i32) {
    %c0_i32 = arith.constant 0 : i32
    %c0_i32_0 = arith.constant 0 : i32
    return %arg0, %c0_i32 : i32, i32
  }
  func.func @transform_2(%arg0: i32) -> (i32, i32) {
    %c0_i32 = arith.constant 0 : i32
    %c0_i32_0 = arith.constant 0 : i32
    return %arg0, %c0_i32 : i32, i32
  }
  func.func @transform_3(%arg0: i32) -> (i32, i32, i32) {
    %c0_i32 = arith.constant 0 : i32
    %c0_i32_0 = arith.constant 0 : i32
    %c0_i32_1 = arith.constant 0 : i32
    return %arg0, %c0_i32, %c0_i32_0 : i32, i32, i32
  }
  func.func @transform_4(%arg0: i32) -> (i32, i32) {
    %c0_i32 = arith.constant 0 : i32
    %c0_i32_0 = arith.constant 0 : i32
    return %arg0, %c0_i32 : i32, i32
  }
}

</mosaic_0001>

<llo_original>
// kernel: tpu_custom_call.1
$region0: #{tpu_custom_call.1}
  #allocation0 [shape = 'u32[]', space=smem, size = 0x4, offset = 0x4, fixed_abs, tag = 'smem constant byte address 0x4 - core index']
  #allocation1 [shape = 'u32[144,128]{1,0:T(1,128)}', space=vmem, size = 0x12000, scoped, tag = 'internal scratch']
  %s0 = inlined_call_operand.vmem [shape: f32[8,32], index: 0, kind: input, shape index: {}]
  %s1 = inlined_call_operand.hbm [shape: f32[8,32], index: 1, kind: input, shape index: {}]
  %s2 = inlined_call_operand.vmem [shape: f32[8,1], index: 2, kind: input, shape index: {}]
  %s3 = inlined_call_operand.hbm [shape: f32[1,1,1], index: 3, kind: output, shape index: {0}]
  %s4 = inlined_call_operand.vmem [shape: f32[8,1], index: 4, kind: output, shape index: {1}]
  %5 = xla_tuple %s3, %s4
  %s6 = sld [smem:[#allocation0]]
  $region34: #{tpu_custom_call.1} parent=0
    _
  %s8 = ssub.s32 1, %s6
  %s9 = scalar_select 0, %s8, %s6
  $region1: #{tpu_custom_call.1} parent=0
    #allocation2 [shape = 'u8[4096]{0}', space=vmem, size = 0x1000, scoped, tag = 'input window, operand 1, single buffered']
    #allocation3 [shape = 's32[1]{0}', space=sflag, size = 0x4, scoped, tag = 'scoped memory for tpu_custom_call.1']
    #allocation4 [shape = 's32[1]{0}', space=sflag, size = 0x4, scoped, tag = 'scoped memory for tpu_custom_call.1']
    #allocation5 [shape = 'u8[512]{0}', space=vmem, size = 0x400, scoped, tag = 'output window, operand 0, single buffered']
    %10 = vsyncpa [#allocation3], 0
    %11 = vsyncpa [#allocation4], 0
    // Predicated region
    $region2: #{tpu_custom_call.1} parent=1 // pred_check
      _
    $region3: #{tpu_custom_call.1} parent=1 // pred_check_branch
      %13 = sbr.rel (0) target = $region5
    $region4: #{tpu_custom_call.1} parent=1 // pred_region
      _
    $region5: #{tpu_custom_call.1} parent=1 // pred_fallthru
      _
    // Predicated region
    $region6: #{tpu_custom_call.1} parent=1 // pred_check
      _
    $region7: #{tpu_custom_call.1} parent=1 // pred_check_branch
      %15 = sbr.rel (0) target = $region9
    $region8: #{tpu_custom_call.1} parent=1 // pred_region
      %s17 = ssub.s32 128, 128
      %18 = vsyncadd [#allocation3], %s17
      %s20 = sshll.u32 [#allocation2], 4
      %s21 = int_to_ptr.vmem [resolvable:$true] %s20
      %23 = dma.hbm_to_vmem [thread:$0]  %s1, 128, %s21, [#allocation3]
    $region9: #{tpu_custom_call.1} parent=1 // pred_fallthru
      _
    // Predicated region
    $region10: #{tpu_custom_call.1} parent=1 // pred_check
      _
    $region11: #{tpu_custom_call.1} parent=1 // pred_check_branch
      %25 = sbr.rel (0) target = $region13
    $region12: #{tpu_custom_call.1} parent=1 // pred_region
      _
    $region13: #{tpu_custom_call.1} parent=1 // pred_fallthru
      _
    // Predicated region
    $region14: #{tpu_custom_call.1} parent=1 // pred_check
      _
    $region15: #{tpu_custom_call.1} parent=1 // pred_check_branch
      %27 = sbr.rel (0) target = $region17
    $region16: #{tpu_custom_call.1} parent=1 // pred_region
      %28 = dma.done [#allocation3], 128
    $region17: #{tpu_custom_call.1} parent=1 // pred_fallthru
      _
    %v29 = vlaneseq
    %v30 = vshrl.u32 %v29, 7
    %s31 = smul.u32 0, 8
    %v32 = vstv %s31
    %v33 = vadd.s32 %v30, %v32
    %vm34 = vcmp.lt.s32.totalorder %v33, 8
    %v35 = vld [vmem:[%s0] sm:$0xff]
    %v36 = vld [vmem:[#allocation2] sm:$0xff]
    %v37 = vsub.f32 %v35, %v36
    %v38 = vsel %vm34, 1, 0
    %vm39 = vcmp.eq.s32.totalorder %v38, 1
    %v40 = vsel %vm39, %v37, 0.0
    %v41 = vmul.f32 %v40, %v40
    %vm42 = vcmask 261120
    %v43 = vsel %vm42, %v41, 0.0
    %44 = vadd.xlane.f32.xlu0 %v43
    %v45 = vpop.xlane.xlu0 %44
    %v46 = vrsqrt.pop %v45
    %v47 = vmul.f32 %v45, %v46
    %vm48 = vcmp.eq.f32.partialorder %v45, inf
    %v49 = vsel %vm48, %v45, %v47
    %vm50 = vcmp.eq.f32.partialorder %v45, 0.0
    %v51 = vand.u32 %v45, 2147483648
    %v52 = vsel %vm50, %v51, %v49
    %v53 = vld [vmem:[%s2] sm:$0xff]
    %v54 = vsub.f32 %v52, 0.5
    %v55 = vmax.f32 %v54, 0.0
    %v56 = vsub.f32 2.0, %v52
    %v57 = vmax.f32 %v56, 0.0
    %v58 = vmul.f32 %v55, %v55
    %v59 = vmul.f32 %v53, %v58
    %v60 = vsub.f32 1.0, %v53
    %v61 = vmul.f32 %v57, %v57
    %v62 = vmul.f32 %v60, %v61
    %v63 = vadd.f32 %v59, %v62
    %v64 = vsel %vm34, %v63, 0.0
    %vm65 = vcmask 7168
    %v66 = vsel %vm65, %v64, 0.0
    %67 = vadd.xlane.f32.xlu0 %v66
    %v68 = vpop.xlane.xlu0 %67
    %v69 = vrot.slane %v68, 4
    %v70 = vadd.f32 %v68, %v69
    %v71 = vrot.slane %v70, 2
    %v72 = vadd.f32 %v70, %v71
    %v73 = vrot.slane %v72, 1
    %v74 = vadd.f32 %v72, %v73
    %s75 = vtos %v74
    %v76 = vstv %s75
    %vm77 = vcmask 0
    %78 = vst.msk [vmem:[#allocation5] sm:$0x1] %vm77, %v76
    %79 = vst.msk [vmem:[%s4] sm:$0xff] %vm65, %v52
    // Predicated region
    $region18: #{tpu_custom_call.1} parent=1 // pred_check
      _
    $region19: #{tpu_custom_call.1} parent=1 // pred_check_branch
      %81 = sbr.rel (0) target = $region21
    $region20: #{tpu_custom_call.1} parent=1 // pred_region
      %s83 = ssub.s32 16, 16
      %84 = vsyncadd [#allocation4], %s83
      %s86 = sshll.u32 [#allocation5], 4
      %s87 = int_to_ptr.vmem [resolvable:$true] %s86
      %89 = dma.vmem_to_hbm [thread:$0]  %s87, 16, %s3, [#allocation4]
    $region21: #{tpu_custom_call.1} parent=1 // pred_fallthru
      _
    // Predicated region
    $region22: #{tpu_custom_call.1} parent=1 // pred_check
      _
    $region23: #{tpu_custom_call.1} parent=1 // pred_check_branch
      %91 = sbr.rel (0) target = $region25
    $region24: #{tpu_custom_call.1} parent=1 // pred_region
      _
    $region25: #{tpu_custom_call.1} parent=1 // pred_fallthru
      _
    // Predicated region
    $region26: #{tpu_custom_call.1} parent=1 // pred_check
      _
    $region27: #{tpu_custom_call.1} parent=1 // pred_check_branch
      %93 = sbr.rel (0) target = $region29
    $region28: #{tpu_custom_call.1} parent=1 // pred_region
      %94 = dma.done [#allocation4], 16
    $region29: #{tpu_custom_call.1} parent=1 // pred_fallthru
      _
    // Predicated region
    $region30: #{tpu_custom_call.1} parent=1 // pred_check
      _
    $region31: #{tpu_custom_call.1} parent=1 // pred_check_branch
      %96 = sbr.rel (0) target = $region33
    $region32: #{tpu_custom_call.1} parent=1 // pred_region
      _
    $region33: #{tpu_custom_call.1} parent=1 // pred_fallthru
      _
    %97 = vsyncpa [#allocation3], 1
    %98 = vsyncpa [#allocation4], 1

</llo_original>
